<compile_context>
chip_gen: v5e
topology: v5e:2x2
jax: 0.10.0
libtpu: 0.0.40
codegen_flags: <defaults>
</compile_context>

<pallas_src>
import functools

import jax
import jax.numpy as jnp
from jax.experimental import pallas as pl
from jax.experimental.pallas import tpu as pltpu

GN_EPS = 1e-5  # PyTorch GroupNorm default eps


def _attention_sa_kernel(p_ref, x_ref, o_ref, *, hw, cc, blocks):
    """One grid step.

    p_ref : (4, cc, 1) f32, rows = [cweight, cbias, A=sw*gw, B=sw*gb+sb]
    x_ref : (T, n_blocks*cc, HW)  input window (pre-shuffle channel order)
    o_ref : (T, rows, lanes)      output window (channel shuffle folded in)
    blocks: static tuple of (c_off, r_off, lane_off, is_chan) per cc-block.
            Stores are sublane/lane-misaligned (masked) only when cc % 8 != 0
            or HW % 128 != 0 -- correct either way, perf-only concern.
    """
    inv_hw = jnp.float32(1.0 / hw)
    cw = p_ref[0:1]          # (1, cc, 1)
    cb = p_ref[1:2]
    a_ = p_ref[2:3]          # sweight * gn.weight
    b_ = p_ref[3:4]          # sweight * gn.bias + sbias

    for c_off, r_off, lane_off, is_chan in blocks:
        xb = x_ref[:, c_off:c_off + cc, :].astype(jnp.float32)      # (T, cc, HW)
        mean = jnp.sum(xb, axis=-1, keepdims=True) * inv_hw         # (T, cc, 1)
        if is_chan:
            # Channel-attention branch: gate depends only on the per-channel
            # mean -> tiny per-row sigmoid, one multiply over HW.
            gate = jax.nn.sigmoid(cw * mean + cb)                   # (T, cc, 1)
        else:
            # Spatial branch: per-channel GroupNorm (num_groups == channels)
            # folded with both affine layers into z = scale*x + shift.
            sq = jnp.sum(xb * xb, axis=-1, keepdims=True) * inv_hw
            var = jnp.maximum(sq - mean * mean, 0.0)                # one-pass, clamped
            scale = a_ * jax.lax.rsqrt(var + GN_EPS)                # (T, cc, 1)
            shift = b_ - scale * mean
            gate = jax.nn.sigmoid(scale * xb + shift)               # (T, cc, HW)
        o_ref[:, r_off:r_off + cc, lane_off:lane_off + hw] = \
            (xb * gate).astype(o_ref.dtype)


def _pack_params(params, cc):
    """Fold (cweight, cbias, sweight, sbias, gn.weight, gn.bias) -> (4, cc, 1)."""
    cw, cb, sw, sb, gw, gb = [jnp.asarray(p, jnp.float32).reshape(cc) for p in params]
    a_ = sw * gw
    b_ = sw * gb + sb
    return jnp.stack([cw, cb, a_, b_], axis=0).reshape(4, cc, 1)


def _vmem_limit_bytes():
    """Generation-aware scoped-VMEM limit (≈100 MiB v5e/v6e, ≈50 MiB v7x)."""
    try:
        cap = int(pltpu.get_tpu_info().vmem_capacity_bytes)
    except Exception:
        cap = 64 << 20  # conservative (v7x-sized) fallback
    return max(32 << 20, min(int(cap * 0.78), cap - (8 << 20)))


def attention_sa(x, params, *, num_heads, groups,
                 vmem_fraction_for_tiles=0.6, min_grid_steps=4,
                 _force_chunked=False):
    """x: (B, C, H, W), C = num_heads * channel. Matches Attention_sa.forward."""
    B, C, H, W = x.shape
    channel = C // num_heads
    assert channel * num_heads == C and channel % (2 * groups) == 0
    cc = channel // (2 * groups)
    half = channel // 2
    HW = H * W
    BH = B * num_heads

    ptab = _pack_params(params, cc)              # (4, cc, 1), resident in VMEM
    xv = x.reshape(BH, channel, HW)              # contiguous view, no copy

    vmem_limit = _vmem_limit_bytes()
    budget = int(vmem_limit * vmem_fraction_for_tiles)
    itemsize = x.dtype.itemsize
    # Real per-sample footprint: input + output tiles (double-buffered) plus a
    # couple of live f32 block-sized temporaries inside the per-block loop.
    per_sample = 4 * channel * HW * itemsize + 8 * cc * HW * 4

    chunk_ok = (groups >= 2 and groups % 2 == 0
                and (2 * cc) % 8 == 0 and HW % 128 == 0)
    use_chunked = chunk_ok and (_force_chunked or per_sample > budget)

    out_shape = jax.ShapeDtypeStruct((BH, half, 2 * HW), x.dtype)

    if not use_chunked:
        # ---- main path: grid over (batch*head) samples, T samples per step ----
        # TODO(synk): samples larger than the VMEM budget whose shapes do not
        # meet the group-chunked path's alignment constraints fall through here
        # with T=1 and may exceed the scoped VMEM limit on v7x.
        t_bytes = max(1, budget // per_sample)
        steps_target = max(1, min(min_grid_steps, BH))   # keep >=2 steps for megacore
        t_steps = max(1, BH // steps_target)
        T = int(max(1, min(t_bytes, t_steps, BH)))
        grid = (pl.cdiv(BH, T),)
        blocks = tuple((m * cc, (m % groups) * cc, (m // groups) * HW, (m % 2 == 0))
                       for m in range(2 * groups))
        kernel = functools.partial(_attention_sa_kernel, hw=HW, cc=cc, blocks=blocks)
        out = pl.pallas_call(
            kernel,
            out_shape=out_shape,
            grid_spec=pltpu.PrefetchScalarGridSpec(
                num_scalar_prefetch=0,
                grid=grid,
                in_specs=[
                    pl.BlockSpec((4, cc, 1), lambda i: (0, 0, 0)),
                    pl.BlockSpec((T, channel, HW), lambda i: (i, 0, 0)),
                ],
                out_specs=pl.BlockSpec((T, half, 2 * HW), lambda i: (i, 0, 0)),
            ),
            compiler_params=pltpu.CompilerParams(
                dimension_semantics=("parallel",),
                vmem_limit_bytes=vmem_limit,
            ),
        )(ptab, xv)
    else:
        # ---- chunked path: one (sample, group) pair of 2*cc channels per step ----
        # Group g's 2*cc channels (channel-attn block + spatial block) map to a
        # rectangular output window: row-block g % (groups//2), lane-block
        # g // (groups//2) of the (half, 2*HW) per-sample output.
        gg = groups // 2
        blocks = tuple((l * cc, l * cc, 0, (l % 2 == 0)) for l in range(2))
        kernel = functools.partial(_attention_sa_kernel, hw=HW, cc=cc, blocks=blocks)
        out = pl.pallas_call(
            kernel,
            out_shape=out_shape,
            grid_spec=pltpu.PrefetchScalarGridSpec(
                num_scalar_prefetch=0,
                grid=(BH, groups),
                in_specs=[
                    pl.BlockSpec((4, cc, 1), lambda i, g: (0, 0, 0)),
                    pl.BlockSpec((1, 2 * cc, HW), lambda i, g: (i, g, 0)),
                ],
                out_specs=pl.BlockSpec((1, 2 * cc, HW),
                                       lambda i, g: (i, g % gg, g // gg)),
            ),
            compiler_params=pltpu.CompilerParams(
                dimension_semantics=("parallel", "parallel"),
                vmem_limit_bytes=vmem_limit,
            ),
        )(ptab, xv)

    # (BH, half, 2*HW) is contiguous-identical to the shuffled (B, C, H, W).
    return out.reshape(B, C, H, W)


def attention_sa_ref(x, params, *, num_heads, groups):
    """Pure-JAX reference mirroring the PyTorch forward exactly."""
    cw, cb, sw, sb, gw, gb = params
    B, C, H, W = x.shape
    channel = C // num_heads
    cc = channel // (2 * groups)
    r = lambda p: p.reshape(1, cc, 1, 1)
    outs = []
    for h_idx in range(num_heads):
        head = x[:, h_idx * channel:(h_idx + 1) * channel]
        head = head.reshape(B * groups, channel // groups, H, W)
        x0, x1 = head[:, :cc], head[:, cc:]
        xn = jnp.mean(x0, axis=(2, 3), keepdims=True)
        xn = r(cw) * xn + r(cb)
        xn = x0 * jax.nn.sigmoid(xn)
        m = jnp.mean(x1, axis=(2, 3), keepdims=True)
        v = jnp.mean((x1 - m) ** 2, axis=(2, 3), keepdims=True)
        xs = (x1 - m) / jnp.sqrt(v + GN_EPS)
        xs = xs * r(gw) + r(gb)
        xs = r(sw) * xs + r(sb)
        xs = x1 * jax.nn.sigmoid(xs)
        out = jnp.concatenate([xn, xs], axis=1)
        out = out.reshape(B, channel, H, W)
        out = out.reshape(B, 2, channel // 2, H, W).transpose(0, 2, 1, 3, 4)
        out = out.reshape(B, channel, H, W)
        outs.append(out)
    return jnp.concatenate(outs, axis=1)


if __name__ == "__main__":
    def run_case(key, B, num_heads, groups, channel, H, W, **kw):
        C = num_heads * channel
        cc = channel // (2 * groups)
        ks = jax.random.split(key, 7)
        x = jax.random.normal(ks[0], (B, C, H, W), dtype=jnp.float32)
        cw = 0.1 * jax.random.normal(ks[1], (cc,), dtype=jnp.float32)
        cb = 1.0 + 0.1 * jax.random.normal(ks[2], (cc,), dtype=jnp.float32)
        sw = 0.1 * jax.random.normal(ks[3], (cc,), dtype=jnp.float32)
        sb = 1.0 + 0.1 * jax.random.normal(ks[4], (cc,), dtype=jnp.float32)
        gw = 1.0 + 0.1 * jax.random.normal(ks[5], (cc,), dtype=jnp.float32)
        gb = 0.1 * jax.random.normal(ks[6], (cc,), dtype=jnp.float32)
        params = (cw, cb, sw, sb, gw, gb)
        ref = attention_sa_ref(x, params, num_heads=num_heads, groups=groups)
        out = jax.block_until_ready(
            attention_sa(x, params, num_heads=num_heads, groups=groups, **kw))
        assert out.shape == ref.shape, (out.shape, ref.shape)
        err = float(jnp.max(jnp.abs(out - ref)))
        assert err < 2e-5, err

    k0, k1, k2 = jax.random.split(jax.random.PRNGKey(0), 3)
    # Main path, several grid steps (megacore-friendly, pipelined).
    run_case(k0, B=2, num_heads=2, groups=2, channel=8, H=16, W=16)
    # Main path, several samples batched into a single large tile.
    run_case(k1, B=2, num_heads=2, groups=2, channel=8, H=16, W=16, min_grid_steps=1)
    # Group-chunked large-sample fallback path (forced for test coverage).
    run_case(k2, B=2, num_heads=1, groups=2, channel=32, H=16, W=16, _force_chunked=True)

    print("KERNEL_OK")
</pallas_src>

<mosaic_0001>
module attributes {stable_mosaic.version = 11 : i64} {
  func.func @_attention_sa_kernel(%arg0: i32, %arg1: memref<4x2x1xf32, #tpu.memory_space<vmem>>, %arg2: memref<1x8x256xf32, #tpu.memory_space<vmem>>, %arg3: memref<1x4x512xf32, #tpu.memory_space<vmem>>) attributes {dimension_semantics = [#tpu.dimension_semantics<parallel>], iteration_bounds = array<i64: 4>, scalar_prefetch = 0 : i64, scratch_operands = 0 : i64, tpu.core_type = #tpu.core_type<tc>, window_params = [{pipeline_mode = #tpu.pipeline_mode<synchronous>, transform_indices = @transform_0, window_bounds = array<i64: 4, 2, 1>}, {transform_indices = @transform_1, window_bounds = array<i64: 1, 8, 256>}, {transform_indices = @transform_2, window_bounds = array<i64: 1, 4, 512>}]} {
    %c0 = arith.constant 0 : index
    %c0_0 = arith.constant 0 : index
    %c0_1 = arith.constant 0 : index
    %0 = vector.load %arg1[%c0, %c0_0, %c0_1] : memref<4x2x1xf32, #tpu.memory_space<vmem>>, vector<1x2x1xf32>
    %c1 = arith.constant 1 : index
    %c0_2 = arith.constant 0 : index
    %c0_3 = arith.constant 0 : index
    %1 = vector.load %arg1[%c1, %c0_2, %c0_3] : memref<4x2x1xf32, #tpu.memory_space<vmem>>, vector<1x2x1xf32>
    %c2 = arith.constant 2 : index
    %c0_4 = arith.constant 0 : index
    %c0_5 = arith.constant 0 : index
    %2 = vector.load %arg1[%c2, %c0_4, %c0_5] : memref<4x2x1xf32, #tpu.memory_space<vmem>>, vector<1x2x1xf32>
    %c3 = arith.constant 3 : index
    %c0_6 = arith.constant 0 : index
    %c0_7 = arith.constant 0 : index
    %3 = vector.load %arg1[%c3, %c0_6, %c0_7] : memref<4x2x1xf32, #tpu.memory_space<vmem>>, vector<1x2x1xf32>
    %c0_8 = arith.constant 0 : index
    %c0_9 = arith.constant 0 : index
    %c0_10 = arith.constant 0 : index
    %4 = vector.load %arg2[%c0_8, %c0_9, %c0_10] : memref<1x8x256xf32, #tpu.memory_space<vmem>>, vector<1x2x256xf32>
    %cst = arith.constant dense<0.000000e+00> : vector<1x2xf32>
    %5 = vector.multi_reduction <add>, %4, %cst [2] : vector<1x2x256xf32> to vector<1x2xf32>
    %6 = vector.shape_cast %5 : vector<1x2xf32> to vector<1x2x1xf32>
    %cst_11 = arith.constant 3.906250e-03 : f32
    %7 = vector.broadcast %cst_11 : f32 to vector<1x2x1xf32>
    %8 = arith.mulf %6, %7 : vector<1x2x1xf32>
    %9 = arith.mulf %0, %8 : vector<1x2x1xf32>
    %10 = arith.addf %9, %1 : vector<1x2x1xf32>
    %11 = arith.negf %10 : vector<1x2x1xf32>
    %12 = math.exp %11 : vector<1x2x1xf32>
    %cst_12 = arith.constant 1.000000e+00 : f32
    %13 = vector.broadcast %cst_12 : f32 to vector<1x2x1xf32>
    %14 = arith.addf %13, %12 : vector<1x2x1xf32>
    %15 = arith.divf %13, %14 : vector<1x2x1xf32>
    %16 = vector.broadcast %15 : vector<1x2x1xf32> to vector<1x2x256xf32>
    %17 = arith.mulf %4, %16 : vector<1x2x256xf32>
    %c0_13 = arith.constant 0 : index
    %c0_14 = arith.constant 0 : index
    %c0_15 = arith.constant 0 : index
    %18 = vector.load %arg3[%c0_13, %c0_14, %c0_15] : memref<1x4x512xf32, #tpu.memory_space<vmem>>, vector<1x2x256xf32>
    tpu.vector_store %arg3[%c0_13, %c0_14, %c0_15], %17 {strides = array<i32>} : memref<1x4x512xf32, #tpu.memory_space<vmem>>, vector<1x2x256xf32>,
    %c0_16 = arith.constant 0 : index
    %c2_17 = arith.constant 2 : index
    %c0_18 = arith.constant 0 : index
    %19 = vector.load %arg2[%c0_16, %c2_17, %c0_18] : memref<1x8x256xf32, #tpu.memory_space<vmem>>, vector<1x2x256xf32>
    %cst_19 = arith.constant dense<0.000000e+00> : vector<1x2xf32>
    %20 = vector.multi_reduction <add>, %19, %cst_19 [2] : vector<1x2x256xf32> to vector<1x2xf32>
    %21 = vector.shape_cast %20 : vector<1x2xf32> to vector<1x2x1xf32>
    %cst_20 = arith.constant 3.906250e-03 : f32
    %22 = vector.broadcast %cst_20 : f32 to vector<1x2x1xf32>
    %23 = arith.mulf %21, %22 : vector<1x2x1xf32>
    %24 = arith.mulf %19, %19 : vector<1x2x256xf32>
    %cst_21 = arith.constant dense<0.000000e+00> : vector<1x2xf32>
    %25 = vector.multi_reduction <add>, %24, %cst_21 [2] : vector<1x2x256xf32> to vector<1x2xf32>
    %26 = vector.shape_cast %25 : vector<1x2xf32> to vector<1x2x1xf32>
    %cst_22 = arith.constant 3.906250e-03 : f32
    %27 = vector.broadcast %cst_22 : f32 to vector<1x2x1xf32>
    %28 = arith.mulf %26, %27 : vector<1x2x1xf32>
    %29 = arith.mulf %23, %23 : vector<1x2x1xf32>
    %30 = arith.subf %28, %29 : vector<1x2x1xf32>
    %cst_23 = arith.constant 0.000000e+00 : f32
    %31 = vector.broadcast %cst_23 : f32 to vector<1x2x1xf32>
    %32 = arith.maximumf %30, %31 : vector<1x2x1xf32>
    %cst_24 = arith.constant 9.99999974E-6 : f32
    %33 = vector.broadcast %cst_24 : f32 to vector<1x2x1xf32>
    %34 = arith.addf %32, %33 : vector<1x2x1xf32>
    %35 = math.rsqrt %34 : vector<1x2x1xf32>
    %36 = arith.mulf %2, %35 : vector<1x2x1xf32>
    %37 = arith.mulf %36, %23 : vector<1x2x1xf32>
    %38 = arith.subf %3, %37 : vector<1x2x1xf32>
    %39 = vector.broadcast %36 : vector<1x2x1xf32> to vector<1x2x256xf32>
    %40 = arith.mulf %39, %19 : vector<1x2x256xf32>
    %41 = vector.broadcast %38 : vector<1x2x1xf32> to vector<1x2x256xf32>
    %42 = arith.addf %40, %41 : vector<1x2x256xf32>
    %43 = arith.negf %42 : vector<1x2x256xf32>
    %44 = math.exp %43 : vector<1x2x256xf32>
    %cst_25 = arith.constant 1.000000e+00 : f32
    %45 = vector.broadcast %cst_25 : f32 to vector<1x2x256xf32>
    %46 = arith.addf %45, %44 : vector<1x2x256xf32>
    %47 = arith.divf %45, %46 : vector<1x2x256xf32>
    %48 = arith.mulf %19, %47 : vector<1x2x256xf32>
    %c0_26 = arith.constant 0 : index
    %c2_27 = arith.constant 2 : index
    %c0_28 = arith.constant 0 : index
    %49 = vector.load %arg3[%c0_26, %c2_27, %c0_28] : memref<1x4x512xf32, #tpu.memory_space<vmem>>, vector<1x2x256xf32>
    tpu.vector_store %arg3[%c0_26, %c2_27, %c0_28], %48 {strides = array<i32>} : memref<1x4x512xf32, #tpu.memory_space<vmem>>, vector<1x2x256xf32>,
    %c0_29 = arith.constant 0 : index
    %c4 = arith.constant 4 : index
    %c0_30 = arith.constant 0 : index
    %50 = vector.load %arg2[%c0_29, %c4, %c0_30] : memref<1x8x256xf32, #tpu.memory_space<vmem>>, vector<1x2x256xf32>
    %cst_31 = arith.constant dense<0.000000e+00> : vector<1x2xf32>
    %51 = vector.multi_reduction <add>, %50, %cst_31 [2] : vector<1x2x256xf32> to vector<1x2xf32>
    %52 = vector.shape_cast %51 : vector<1x2xf32> to vector<1x2x1xf32>
    %cst_32 = arith.constant 3.906250e-03 : f32
    %53 = vector.broadcast %cst_32 : f32 to vector<1x2x1xf32>
    %54 = arith.mulf %52, %53 : vector<1x2x1xf32>
    %55 = arith.mulf %0, %54 : vector<1x2x1xf32>
    %56 = arith.addf %55, %1 : vector<1x2x1xf32>
    %57 = arith.negf %56 : vector<1x2x1xf32>
    %58 = math.exp %57 : vector<1x2x1xf32>
    %cst_33 = arith.constant 1.000000e+00 : f32
    %59 = vector.broadcast %cst_33 : f32 to vector<1x2x1xf32>
    %60 = arith.addf %59, %58 : vector<1x2x1xf32>
    %61 = arith.divf %59, %60 : vector<1x2x1xf32>
    %62 = vector.broadcast %61 : vector<1x2x1xf32> to vector<1x2x256xf32>
    %63 = arith.mulf %50, %62 : vector<1x2x256xf32>
    %c0_34 = arith.constant 0 : index
    %c0_35 = arith.constant 0 : index
    %c256 = arith.constant 256 : index
    %64 = vector.load %arg3[%c0_34, %c0_35, %c256] : memref<1x4x512xf32, #tpu.memory_space<vmem>>, vector<1x2x256xf32>
    tpu.vector_store %arg3[%c0_34, %c0_35, %c256], %63 {strides = array<i32>} : memref<1x4x512xf32, #tpu.memory_space<vmem>>, vector<1x2x256xf32>,
    %c0_36 = arith.constant 0 : index
    %c6 = arith.constant 6 : index
    %c0_37 = arith.constant 0 : index
    %65 = vector.load %arg2[%c0_36, %c6, %c0_37] : memref<1x8x256xf32, #tpu.memory_space<vmem>>, vector<1x2x256xf32>
    %cst_38 = arith.constant dense<0.000000e+00> : vector<1x2xf32>
    %66 = vector.multi_reduction <add>, %65, %cst_38 [2] : vector<1x2x256xf32> to vector<1x2xf32>
    %67 = vector.shape_cast %66 : vector<1x2xf32> to vector<1x2x1xf32>
    %cst_39 = arith.constant 3.906250e-03 : f32
    %68 = vector.broadcast %cst_39 : f32 to vector<1x2x1xf32>
    %69 = arith.mulf %67, %68 : vector<1x2x1xf32>
    %70 = arith.mulf %65, %65 : vector<1x2x256xf32>
    %cst_40 = arith.constant dense<0.000000e+00> : vector<1x2xf32>
    %71 = vector.multi_reduction <add>, %70, %cst_40 [2] : vector<1x2x256xf32> to vector<1x2xf32>
    %72 = vector.shape_cast %71 : vector<1x2xf32> to vector<1x2x1xf32>
    %cst_41 = arith.constant 3.906250e-03 : f32
    %73 = vector.broadcast %cst_41 : f32 to vector<1x2x1xf32>
    %74 = arith.mulf %72, %73 : vector<1x2x1xf32>
    %75 = arith.mulf %69, %69 : vector<1x2x1xf32>
    %76 = arith.subf %74, %75 : vector<1x2x1xf32>
    %cst_42 = arith.constant 0.000000e+00 : f32
    %77 = vector.broadcast %cst_42 : f32 to vector<1x2x1xf32>
    %78 = arith.maximumf %76, %77 : vector<1x2x1xf32>
    %cst_43 = arith.constant 9.99999974E-6 : f32
    %79 = vector.broadcast %cst_43 : f32 to vector<1x2x1xf32>
    %80 = arith.addf %78, %79 : vector<1x2x1xf32>
    %81 = math.rsqrt %80 : vector<1x2x1xf32>
    %82 = arith.mulf %2, %81 : vector<1x2x1xf32>
    %83 = arith.mulf %82, %69 : vector<1x2x1xf32>
    %84 = arith.subf %3, %83 : vector<1x2x1xf32>
    %85 = vector.broadcast %82 : vector<1x2x1xf32> to vector<1x2x256xf32>
    %86 = arith.mulf %85, %65 : vector<1x2x256xf32>
    %87 = vector.broadcast %84 : vector<1x2x1xf32> to vector<1x2x256xf32>
    %88 = arith.addf %86, %87 : vector<1x2x256xf32>
    %89 = arith.negf %88 : vector<1x2x256xf32>
    %90 = math.exp %89 : vector<1x2x256xf32>
    %cst_44 = arith.constant 1.000000e+00 : f32
    %91 = vector.broadcast %cst_44 : f32 to vector<1x2x256xf32>
    %92 = arith.addf %91, %90 : vector<1x2x256xf32>
    %93 = arith.divf %91, %92 : vector<1x2x256xf32>
    %94 = arith.mulf %65, %93 : vector<1x2x256xf32>
    %c0_45 = arith.constant 0 : index
    %c2_46 = arith.constant 2 : index
    %c256_47 = arith.constant 256 : index
    %95 = vector.load %arg3[%c0_45, %c2_46, %c256_47] : memref<1x4x512xf32, #tpu.memory_space<vmem>>, vector<1x2x256xf32>
    tpu.vector_store %arg3[%c0_45, %c2_46, %c256_47], %94 {strides = array<i32>} : memref<1x4x512xf32, #tpu.memory_space<vmem>>, vector<1x2x256xf32>,
    return
  }
  func.func @transform_0(%arg0: i32) -> (i32, i32, i32) {
    %c0_i32 = arith.constant 0 : i32
    %c0_i32_0 = arith.constant 0 : i32
    %c0_i32_1 = arith.constant 0 : i32
    %c0_i32_2 = arith.constant 0 : i32
    return %c0_i32, %c0_i32_0, %c0_i32_1 : i32, i32, i32
  }
  func.func @transform_1(%arg0: i32) -> (i32, i32, i32) {
    %c0_i32 = arith.constant 0 : i32
    %c0_i32_0 = arith.constant 0 : i32
    %c0_i32_1 = arith.constant 0 : i32
    return %arg0, %c0_i32, %c0_i32_0 : i32, i32, i32
  }
  func.func @transform_2(%arg0: i32) -> (i32, i32, i32) {
    %c0_i32 = arith.constant 0 : i32
    %c0_i32_0 = arith.constant 0 : i32
    %c0_i32_1 = arith.constant 0 : i32
    return %arg0, %c0_i32, %c0_i32_0 : i32, i32, i32
  }
}

</mosaic_0001>

<llo_original>
// kernel: tpu_custom_call.1
$region0: #{tpu_custom_call.1}
  #allocation0 [shape = 'u32[]', space=smem, size = 0x4, offset = 0x4, fixed_abs, tag = 'smem constant byte address 0x4 - core index']
  #allocation1 [shape = 'u32[72,128]{1,0:T(1,128)}', space=vmem, size = 0x9000, scoped, tag = 'internal scratch']
  %s0 = inlined_call_operand.vmem [shape: f32[4,2,1], index: 0, kind: input, shape index: {}]
  %s1 = inlined_call_operand.hbm [shape: f32[4,8,256], index: 1, kind: input, shape index: {}]
  %s2 = inlined_call_operand.hbm [shape: f32[4,4,512], index: 2, kind: output, shape index: {}]
  %s3 = sld [smem:[#allocation0]]
  $region45: #{tpu_custom_call.1} parent=0
    _
  %s5 = ssub.s32 1, %s3
  %s6 = scalar_select 0, %s5, %s3
  $region1: #{tpu_custom_call.1} parent=0
    #allocation2 [shape = 'u8[16384]{0}', space=vmem, size = 0x4000, scoped, tag = 'input window, operand 1']
    #allocation3 [shape = 's32[2]{0}', space=sflag, size = 0x8, scoped, tag = 'scoped memory for tpu_custom_call.1']
    #allocation4 [shape = 's32[2]{0}', space=sflag, size = 0x8, scoped, tag = 'scoped memory for tpu_custom_call.1']
    #allocation5 [shape = 'u8[16384]{0}', space=vmem, size = 0x4000, scoped, tag = 'output window, operand 0']
    %7 = vsyncpa [#allocation3], 0
    %s8 = scalar_lea.sflag [#allocation3], 1
    %9 = vsyncpa %s8, 0
    %10 = vsyncpa [#allocation4], 0
    %s11 = scalar_lea.sflag [#allocation4], 1
    %12 = vsyncpa %s11, 0
    loop: start=0, step=1, limit=6
    $region2: #{tpu_custom_call.1} parent=1 // loop_pre_header
      _
    $region3: #{tpu_custom_call.1} parent=1 // loop_header
      %s14 = sphi 0, %s18
      %p15 = scmp.ge.s32.totalorder %s14, 6
      %s22 = sphi 0, %s22
      %s24 = sphi 0, %s22
      %s25 = sphi 0, %s24
      %s39 = sphi 0, %s25
      %s45 = sphi 0, %s47
      %s48 = sphi 0, %s45
      %s49 = sphi 0, %s48
      %s65 = sphi 0, %s49
      %s71 = sphi 0, %s73
      %s74 = sphi 0, %s71
      %s75 = sphi 0, %s74
      %s91 = sphi 0, %s75
    $region4: #{tpu_custom_call.1} parent=1 // loop_header_branch
      %17 = sbr.rel (%p15) target = $region8
    $region5: #{tpu_custom_call.1} parent=1 // loop_body
      %s19 = ssub.s32 %s14, 1
      %s20 = ssub.s32 %s14, 2
      %s21 = sadd.s32 %s14, 1
      %s23 = sadd.s32 %s22, 1
      %p26 = scmp.eq.s32.totalorder %s14, 3
      %p27 = scmp.ne.s32.totalorder %s22, %s24
      %p28 = scmp.eq.s32.totalorder %s14, 0
      %p29 = por %p27, %p28
      %p30 = scmp.ne.s32.totalorder %s22, %s24
      %p31 = scmp.eq.s32.totalorder %s19, 3
      %p32 = por %p30, %p31
      %p33 = scmp.ne.s32.totalorder %s24, %s25
      %p34 = scmp.eq.s32.totalorder %s19, 0
      %p35 = por %p33, %p34
      %p36 = scmp.ne.s32.totalorder %s24, %s25
      %p37 = scmp.eq.s32.totalorder %s20, 3
      %p38 = por %p36, %p37
      %p40 = scmp.ne.s32.totalorder %s25, %s39
      %p41 = scmp.eq.s32.totalorder %s20, 0
      %p42 = por %p40, %p41
      %s43 = ssub.s32 %s14, %s21
      %p44 = scmp.eq.s32.totalorder %s43, 0
      %s46 = sadd.s32 %s45, 1
      %s47 = scalar_select %p44, %s45, %s46
      %p50 = pneg %p44
      %p51 = scmp.eq.s32.totalorder %s14, 3
      %p52 = por %p50, %p51
      %p53 = scmp.ne.s32.totalorder %s45, %s48
      %p54 = scmp.eq.s32.totalorder %s14, 0
      %p55 = por %p53, %p54
      %p56 = scmp.ne.s32.totalorder %s45, %s48
      %p57 = scmp.eq.s32.totalorder %s19, 3
      %p58 = por %p56, %p57
      %p59 = scmp.ne.s32.totalorder %s48, %s49
      %p60 = scmp.eq.s32.totalorder %s19, 0
      %p61 = por %p59, %p60
      %p62 = scmp.ne.s32.totalorder %s48, %s49
      %p63 = scmp.eq.s32.totalorder %s20, 3
      %p64 = por %p62, %p63
      %p66 = scmp.ne.s32.totalorder %s49, %s65
      %p67 = scmp.eq.s32.totalorder %s20, 0
      %p68 = por %p66, %p67
      %s69 = ssub.s32 %s14, %s21
      %p70 = scmp.eq.s32.totalorder %s69, 0
      %s72 = sadd.s32 %s71, 1
      %s73 = scalar_select %p70, %s71, %s72
      %p76 = pneg %p70
      %p77 = scmp.eq.s32.totalorder %s14, 3
      %p78 = por %p76, %p77
      %p79 = scmp.ne.s32.totalorder %s71, %s74
      %p80 = scmp.eq.s32.totalorder %s14, 0
      %p81 = por %p79, %p80
      %p82 = scmp.ne.s32.totalorder %s71, %s74
      %p83 = scmp.eq.s32.totalorder %s19, 3
      %p84 = por %p82, %p83
      %p85 = scmp.ne.s32.totalorder %s74, %s75
      %p86 = scmp.eq.s32.totalorder %s19, 0
      %p87 = por %p85, %p86
      %p88 = scmp.ne.s32.totalorder %s74, %s75
      %p89 = scmp.eq.s32.totalorder %s20, 3
      %p90 = por %p88, %p89
      %p92 = scmp.ne.s32.totalorder %s75, %s91
      %p93 = scmp.eq.s32.totalorder %s20, 0
      %p94 = por %p92, %p93
      %p95 = scmp.le.s32.totalorder 1, %s14
      %p96 = scmp.lt.s32.totalorder %s14, 5
      %p97 = pnand %p95, %p96
      %p98 = pneg %p97
      // Predicated region
      $region9: #{tpu_custom_call.1} parent=5 // pred_check
        _
      $region10: #{tpu_custom_call.1} parent=5 // pred_check_branch
        %100 = sbr.rel (%p97) target = $region12
      $region11: #{tpu_custom_call.1} parent=5 // pred_region
        %s101 = ssub.s32 %s14, 1
        // Predicated region
        $region13: #{tpu_custom_call.1} parent=11 // pred_check
          %p102 = pneg %p35
        $region14: #{tpu_custom_call.1} parent=11 // pred_check_branch
          %104 = sbr.rel (%p102) target = $region16
        $region15: #{tpu_custom_call.1} parent=11 // pred_region
          _
        $region16: #{tpu_custom_call.1} parent=11 // pred_fallthru
          _
      $region12: #{tpu_custom_call.1} parent=5 // pred_fallthru
        _
      %p105 = scmp.lt.s32.totalorder %s14, 4
      // Predicated region
      $region17: #{tpu_custom_call.1} parent=5 // pred_check
        %p106 = pneg %p105
      $region18: #{tpu_custom_call.1} parent=5 // pred_check_branch
        %108 = sbr.rel (%p106) target = $region20
      $region19: #{tpu_custom_call.1} parent=5 // pred_region
        // Predicated region
        $region21: #{tpu_custom_call.1} parent=19 // pred_check
          %p109 = pneg %p55
        $region22: #{tpu_custom_call.1} parent=19 // pred_check_branch
          %111 = sbr.rel (%p109) target = $region24
        $region23: #{tpu_custom_call.1} parent=19 // pred_region
          %s112 = sand.u32 %s45, 1
          %s113 = scalar_lea.sflag [#allocation3], %s112
          %s114 = sand.u32 %s45, 1
          %s115 = smul.addr %s114, 16
          %s116 = scalar_lea.vmem [#allocation2], %s115
          %118 = vsyncadd %s113, 0
          %s119 = smul.addr %s14, 2
          %s120 = smul.addr %s119, 8
          %s121 = scalar_lea.hbm %s1, %s120
          %s123 = sshll.u32 %s121, 4
          %s124 = int_to_ptr.hbm [resolvable:$true] %s123
          %s125 = sshll.u32 %s116, 4
          %s126 = int_to_ptr.vmem [resolvable:$true] %s125
          %128 = dma.hbm_to_vmem [thread:$0]  %s124, 256, %s126, %s113
        $region24: #{tpu_custom_call.1} parent=19 // pred_fallthru
          _
      $region20: #{tpu_custom_call.1} parent=5 // pred_fallthru
        _
      %p129 = scmp.le.s32.totalorder 1, %s14
      %p130 = scmp.lt.s32.totalorder %s14, 5
      %p131 = pnand %p129, %p130
      %p132 = pneg %p131
      // Predicated region
      $region25: #{tpu_custom_call.1} parent=5 // pred_check
        _
      $region26: #{tpu_custom_call.1} parent=5 // pred_check_branch
        %134 = sbr.rel (%p131) target = $region28
      $region27: #{tpu_custom_call.1} parent=5 // pred_region
        %s135 = ssub.s32 %s14, 1
        %s136 = sand.u32 %s48, 1
        %s137 = scalar_lea.sflag [#allocation3], %s136
        %s138 = sand.u32 %s48, 1
        %s139 = smul.addr %s138, 16
        %s140 = scalar_lea.vmem [#allocation2], %s139
        // Predicated region
        $region29: #{tpu_custom_call.1} parent=27 // pred_check
          %p141 = pneg %p61
        $region30: #{tpu_custom_call.1} parent=27 // pred_check_branch
          %143 = sbr.rel (%p141) target = $region32
        $region31: #{tpu_custom_call.1} parent=27 // pred_region
          %145 = dma.done %s137, 256
        $region32: #{tpu_custom_call.1} parent=27 // pred_fallthru
          _
        %p146 = pneg %p35
        %p147 = pneg %p32
        %s148 = sand.u32 %s48, 1
        %s149 = scalar_lea.sflag [#allocation3], %s148
        %s150 = sand.u32 %s48, 1
        %s151 = smul.addr %s150, 16
        %s152 = scalar_lea.vmem [#allocation2], %s151
        %p153 = pneg %p61
        %p154 = pneg %p58
        %p155 = pneg %p87
        %p156 = pneg %p84
        %s157 = sand.u32 %s74, 1
        %s158 = scalar_lea.sflag [#allocation4], %s157
        %s159 = sand.u32 %s74, 1
        %s160 = smul.addr %s159, 16
        %s161 = scalar_lea.vmem [#allocation5], %s160
        %v162 = vld [vmem:[%s0] sm:$0x3]
        %s163 = scalar_lea.vmem %s0, 2
        %v164 = vld [vmem:[%s163] sm:$0x3]
        %s165 = scalar_lea.vmem %s0, 4
        %v166 = vld [vmem:[%s165] sm:$0x3]
        %s167 = scalar_lea.vmem %s0, 6
        %v168 = vld [vmem:[%s167] sm:$0x3]
        %v169 = vld [vmem:[%s140] sm:$0x3]
        %v170 = vld [vmem:[%s140 + $0x8] sm:$0x3]
        %vm171 = vcmask 1041408
        %v172 = vsel %vm171, %v169, 0.0
        %v173 = vsel %vm171, %v170, 0.0
        %v174 = vadd.f32 %v172, %v173
        %175 = vadd.xlane.f32.xlu0 %v174
        %v176 = vpop.xlane.xlu0 %175
        %v177 = vmul.f32 %v176, 0.00390625
        %v178 = vmul.f32 %v162, %v177
        %v179 = vadd.f32 %v178, %v164
        %v180 = vxor.u32 %v179, 2147483648
        %v181 = vmul.f32 %v180, 1.442695
        %v182 = vpow.pop %v181
        %v183 = vadd.f32 %v182, 1.0
        %v184 = vrcp.pop %v183
        %v185 = vmul.f32 %v183, %v184
        %v186 = vsub.f32 1.0, %v185
        %v187 = vmul.f32 %v184, %v186
        %v188 = vadd.f32 %v184, %v187
        %vm189 = vweird.f32 %v183
        %vm190 = vweird.f32 %v184
        %vm191 = vmor %vm189, %vm190
        %v192 = vsel %vm191, %v184, %v188
        %v193 = vand.u32 2147483647, %v183
        %vm194 = vcmp.eq.f32.partialorder %v193, 8.507059e+37
        %v195 = vand.u32 %v183, 2147483648
        %v196 = vor.u32 1.1754944e-38, %v195
        %v197 = vsel %vm194, %v196, %v192
        %v198 = vmul.f32 1.0, %v197
        %200 = vset.pattern.permute.xlu0 0
        %201 = vperm.xlu0 %200, %v198
        %v202 = vpop.permute.xlu0 %201
        %v204 = vmul.f32 %v169, %v202
        %v205 = vmul.f32 %v170, %v202
        %v208 = vrot.slane %v205, 4
        %vm209 = vcmask 1043456
        %v210 = vsel %vm209, %v204, %v208
        %212 = vst [vmem:[%s161] sm:$0x33] %v210
        %v213 = vld [vmem:[%s140] sm:$0xc]
        %v214 = vld [vmem:[%s140 + $0x8] sm:$0xc]
        %vm215 = vcmask 1043458
        %v216 = vsel %vm215, %v213, 0.0
        %v217 = vsel %vm215, %v214, 0.0
        %v218 = vadd.f32 %v216, %v217
        %219 = vadd.xlane.f32.xlu0 %v218
        %v220 = vpop.xlane.xlu0 %219
        %v221 = vmul.f32 %v220, 0.00390625
        %v222 = vmul.f32 %v213, %v213
        %v223 = vmul.f32 %v214, %v214
        %v224 = vsel %vm215, %v222, 0.0
        %v225 = vsel %vm215, %v223, 0.0
        %v226 = vadd.f32 %v224, %v225
        %227 = vadd.xlane.f32.xlu0 %v226
        %v228 = vpop.xlane.xlu0 %227
        %v229 = vmul.f32 %v228, 0.00390625
        %v230 = vmul.f32 %v221, %v221
        %v231 = vsub.f32 %v229, %v230
        %v232 = vmax.f32 %v231, 0.0
        %v233 = vadd.f32 %v232, 1e-05
        %v234 = vrsqrt.pop %v233
        %v235 = vmul.f32 %v234, %v233
        %v236 = vmul.f32 %v235, %v234
        %v237 = vmul.f32 0.5, %v236
        %v238 = vsub.f32 1.5, %v237
        %v239 = vmul.f32 %v234, %v238
        %vm240 = vweird.f32 %v233
        %vm241 = vweird.f32 %v234
        %vm242 = vmor %vm240, %vm241
        %v243 = vsel %vm242, %v234, %v239
        %v245 = vrot.slane %v243, 2
        %v247 = vmul.f32 %v166, %v245
        %v249 = vrot.slane %v221, 2
        %v251 = vmul.f32 %v247, %v249
        %v252 = vsub.f32 %v168, %v251
        %254 = vset.pattern.permute.xlu0 0
        %255 = vperm.xlu0 %254, %v247
        %v256 = vpop.permute.xlu0 %255
        %v260 = vrot.slane %v213, 2
        %v261 = vrot.slane %v214, 2
        %v264 = vmul.f32 %v256, %v260
        %v265 = vmul.f32 %v256, %v261
        %267 = vset.pattern.permute.xlu0 0
        %268 = vperm.xlu0 %267, %v252
        %v269 = vpop.permute.xlu0 %268
        %v271 = vadd.f32 %v264, %v269
        %v272 = vadd.f32 %v265, %v269
        %v273 = vxor.u32 %v271, 2147483648
        %v274 = vxor.u32 %v272, 2147483648
        %v275 = vmul.f32 %v273, 1.442695
        %v276 = vpow.pop %v275
        %v277 = vmul.f32 %v274, 1.442695
        %v278 = vpow.pop %v277
        %v279 = vadd.f32 %v276, 1.0
        %v280 = vadd.f32 %v278, 1.0
        %v281 = vrcp.pop %v279
        %v282 = vmul.f32 %v279, %v281
        %v283 = vsub.f32 1.0, %v282
        %v284 = vmul.f32 %v281, %v283
        %v285 = vadd.f32 %v281, %v284
        %vm286 = vweird.f32 %v279
        %vm287 = vweird.f32 %v281
        %vm288 = vmor %vm286, %vm287
        %v289 = vsel %vm288, %v281, %v285
        %v290 = vand.u32 2147483647, %v279
        %vm291 = vcmp.eq.f32.partialorder %v290, 8.507059e+37
        %v292 = vand.u32 %v279, 2147483648
        %v293 = vor.u32 1.1754944e-38, %v292
        %v294 = vsel %vm291, %v293, %v289
        %v295 = vmul.f32 1.0, %v294
        %v296 = vrcp.pop %v280
        %v297 = vmul.f32 %v280, %v296
        %v298 = vsub.f32 1.0, %v297
        %v299 = vmul.f32 %v296, %v298
        %v300 = vadd.f32 %v296, %v299
        %vm301 = vweird.f32 %v280
        %vm302 = vweird.f32 %v296
        %vm303 = vmor %vm301, %vm302
        %v304 = vsel %vm303, %v296, %v300
        %v305 = vand.u32 2147483647, %v280
        %vm306 = vcmp.eq.f32.partialorder %v305, 8.507059e+37
        %v307 = vand.u32 %v280, 2147483648
        %v308 = vor.u32 1.1754944e-38, %v307
        %v309 = vsel %vm306, %v308, %v304
        %v310 = vmul.f32 1.0, %v309
        %v313 = vrot.slane %v295, 6
        %v314 = vrot.slane %v310, 6
        %v317 = vmul.f32 %v213, %v313
        %v318 = vmul.f32 %v214, %v314
        %v321 = vrot.slane %v318, 4
        %v322 = vsel %vm209, %v317, %v321
        %324 = vst [vmem:[%s161] sm:$0xcc] %v322
        %v325 = vld [vmem:[%s140] sm:$0x30]
        %v326 = vld [vmem:[%s140 + $0x8] sm:$0x30]
        %vm327 = vcmask 1045508
        %v328 = vsel %vm327, %v325, 0.0
        %v329 = vsel %vm327, %v326, 0.0
        %v330 = vadd.f32 %v328, %v329
        %331 = vadd.xlane.f32.xlu0 %v330
        %v332 = vpop.xlane.xlu0 %331
        %v333 = vmul.f32 %v332, 0.00390625
        %v335 = vrot.slane %v333, 4
        %v337 = vmul.f32 %v162, %v335
        %v338 = vadd.f32 %v337, %v164
        %v339 = vxor.u32 %v338, 2147483648
        %v340 = vmul.f32 %v339, 1.442695
        %v341 = vpow.pop %v340
        %v342 = vadd.f32 %v341, 1.0
        %v343 = vrcp.pop %v342
        %v344 = vmul.f32 %v342, %v343
        %v345 = vsub.f32 1.0, %v344
        %v346 = vmul.f32 %v343, %v345
        %v347 = vadd.f32 %v343, %v346
        %vm348 = vweird.f32 %v342
        %vm349 = vweird.f32 %v343
        %vm350 = vmor %vm348, %vm349
        %v351 = vsel %vm350, %v343, %v347
        %v352 = vand.u32 2147483647, %v342
        %vm353 = vcmp.eq.f32.partialorder %v352, 8.507059e+37
        %v354 = vand.u32 %v342, 2147483648
        %v355 = vor.u32 1.1754944e-38, %v354
        %v356 = vsel %vm353, %v355, %v351
        %v357 = vmul.f32 1.0, %v356
        %359 = vset.pattern.permute.xlu0 0
        %360 = vperm.xlu0 %359, %v357
        %v361 = vpop.permute.xlu0 %360
        %v362 = vrot.slane %v361, 4
        %v364 = vmul.f32 %v325, %v362
        %v365 = vmul.f32 %v326, %v362
        %368 = vst.sshfl [vmem:[#allocation1] sm:$0xff pattern:$0x75316420] %v364
        %369 = vst.sshfl [vmem:[#allocation1 + $0x8] sm:$0xff pattern:$0x75316420] %v365
        %s370 = scalar_lea.vmem [#allocation1], 1
        %v371 = vld [vmem:[%s370] ss:$2 sm:$0xff]
        %373 = vst [vmem:[%s161 + $0x8] sm:$0x33] %v371
        %v374 = vld [vmem:[%s140] sm:$0xc0]
        %v375 = vld [vmem:[%s140 + $0x8] sm:$0xc0]
        %vm376 = vcmask 1047558
        %v377 = vsel %vm376, %v374, 0.0
        %v378 = vsel %vm376, %v375, 0.0
        %v379 = vadd.f32 %v377, %v378
        %380 = vadd.xlane.f32.xlu0 %v379
        %v381 = vpop.xlane.xlu0 %380
        %v382 = vmul.f32 %v381, 0.00390625
        %v383 = vmul.f32 %v374, %v374
        %v384 = vmul.f32 %v375, %v375
        %v385 = vsel %vm376, %v383, 0.0
        %v386 = vsel %vm376, %v384, 0.0
        %v387 = vadd.f32 %v385, %v386
        %388 = vadd.xlane.f32.xlu0 %v387
        %v389 = vpop.xlane.xlu0 %388
        %v390 = vmul.f32 %v389, 0.00390625
        %v391 = vmul.f32 %v382, %v382
        %v392 = vsub.f32 %v390, %v391
        %v393 = vmax.f32 %v392, 0.0
        %v394 = vadd.f32 %v393, 1e-05
        %v395 = vrsqrt.pop %v394
        %v396 = vmul.f32 %v395, %v394
        %v397 = vmul.f32 %v396, %v395
        %v398 = vmul.f32 0.5, %v397
        %v399 = vsub.f32 1.5, %v398
        %v400 = vmul.f32 %v395, %v399
        %vm401 = vweird.f32 %v394
        %vm402 = vweird.f32 %v395
        %vm403 = vmor %vm401, %vm402
        %v404 = vsel %vm403, %v395, %v400
        %v406 = vrot.slane %v404, 6
        %v408 = vmul.f32 %v166, %v406
        %v410 = vrot.slane %v382, 6
        %v412 = vmul.f32 %v408, %v410
        %v413 = vsub.f32 %v168, %v412
        %415 = vset.pattern.permute.xlu0 0
        %416 = vperm.xlu0 %415, %v408
        %v417 = vpop.permute.xlu0 %416
        %v421 = vrot.slane %v374, 6
        %v422 = vrot.slane %v375, 6
        %v425 = vmul.f32 %v417, %v421
        %v426 = vmul.f32 %v417, %v422
        %428 = vset.pattern.permute.xlu0 0
        %429 = vperm.xlu0 %428, %v413
        %v430 = vpop.permute.xlu0 %429
        %v432 = vadd.f32 %v425, %v430
        %v433 = vadd.f32 %v426, %v430
        %v434 = vxor.u32 %v432, 2147483648
        %v435 = vxor.u32 %v433, 2147483648
        %v436 = vmul.f32 %v434, 1.442695
        %v437 = vpow.pop %v436
        %v438 = vmul.f32 %v435, 1.442695
        %v439 = vpow.pop %v438
        %v440 = vadd.f32 %v437, 1.0
        %v441 = vadd.f32 %v439, 1.0
        %v442 = vrcp.pop %v440
        %v443 = vmul.f32 %v440, %v442
        %v444 = vsub.f32 1.0, %v443
        %v445 = vmul.f32 %v442, %v444
        %v446 = vadd.f32 %v442, %v445
        %vm447 = vweird.f32 %v440
        %vm448 = vweird.f32 %v442
        %vm449 = vmor %vm447, %vm448
        %v450 = vsel %vm449, %v442, %v446
        %v451 = vand.u32 2147483647, %v440
        %vm452 = vcmp.eq.f32.partialorder %v451, 8.507059e+37
        %v453 = vand.u32 %v440, 2147483648
        %v454 = vor.u32 1.1754944e-38, %v453
        %v455 = vsel %vm452, %v454, %v450
        %v456 = vmul.f32 1.0, %v455
        %v457 = vrcp.pop %v441
        %v458 = vmul.f32 %v441, %v457
        %v459 = vsub.f32 1.0, %v458
        %v460 = vmul.f32 %v457, %v459
        %v461 = vadd.f32 %v457, %v460
        %vm462 = vweird.f32 %v441
        %vm463 = vweird.f32 %v457
        %vm464 = vmor %vm462, %vm463
        %v465 = vsel %vm464, %v457, %v461
        %v466 = vand.u32 2147483647, %v441
        %vm467 = vcmp.eq.f32.partialorder %v466, 8.507059e+37
        %v468 = vand.u32 %v441, 2147483648
        %v469 = vor.u32 1.1754944e-38, %v468
        %v470 = vsel %vm467, %v469, %v465
        %v471 = vmul.f32 1.0, %v470
        %v474 = vrot.slane %v456, 2
        %v475 = vrot.slane %v471, 2
        %v478 = vmul.f32 %v374, %v474
        %v479 = vmul.f32 %v375, %v475
        %482 = vst.sshfl [vmem:[#allocation1] sm:$0xff pattern:$0x75316420] %v478
        %483 = vst.sshfl [vmem:[#allocation1 + $0x8] sm:$0xff pattern:$0x75316420] %v479
        %s484 = scalar_lea.vmem [#allocation1], 1
        %v485 = vld [vmem:[%s484] ss:$2 sm:$0xff]
        %487 = vst [vmem:[%s161 + $0x8] sm:$0xcc] %v485
        %s488 = sand.u32 %s74, 1
        %s489 = scalar_lea.sflag [#allocation4], %s488
        %s490 = sand.u32 %s74, 1
        %s491 = smul.addr %s490, 16
        %s492 = scalar_lea.vmem [#allocation5], %s491
        // Predicated region
        $region33: #{tpu_custom_call.1} parent=27 // pred_check
          %p493 = pneg %p84
        $region34: #{tpu_custom_call.1} parent=27 // pred_check_branch
          %495 = sbr.rel (%p493) target = $region36
        $region35: #{tpu_custom_call.1} parent=27 // pred_region
          %497 = vsyncadd %s489, 0
          %s498 = smul.addr %s19, 4
          %s499 = smul.addr %s498, 4
          %s500 = scalar_lea.hbm %s2, %s499
          %s502 = sshll.u32 %s492, 4
          %s503 = int_to_ptr.vmem [resolvable:$true] %s502
          %s504 = sshll.u32 %s500, 4
          %s505 = int_to_ptr.hbm [resolvable:$true] %s504
          %507 = dma.vmem_to_hbm [thread:$0]  %s503, 256, %s505, %s489
        $region36: #{tpu_custom_call.1} parent=27 // pred_fallthru
          _
      $region28: #{tpu_custom_call.1} parent=5 // pred_fallthru
        _
      %p508 = scmp.le.s32.totalorder 2, %s14
      // Predicated region
      $region37: #{tpu_custom_call.1} parent=5 // pred_check
        %p509 = pneg %p508
      $region38: #{tpu_custom_call.1} parent=5 // pred_check_branch
        %511 = sbr.rel (%p509) target = $region40
      $region39: #{tpu_custom_call.1} parent=5 // pred_region
        %s512 = ssub.s32 %s14, 2
        // Predicated region
        $region41: #{tpu_custom_call.1} parent=39 // pred_check
          %p513 = pneg %p90
        $region42: #{tpu_custom_call.1} parent=39 // pred_check_branch
          %515 = sbr.rel (%p513) target = $region44
        $region43: #{tpu_custom_call.1} parent=39 // pred_region
          %s516 = sand.u32 %s75, 1
          %s517 = scalar_lea.sflag [#allocation4], %s516
          %s518 = sand.u32 %s75, 1
          %s519 = smul.addr %s518, 16
          %s520 = scalar_lea.vmem [#allocation5], %s519
          %522 = dma.done %s517, 256
        $region44: #{tpu_custom_call.1} parent=39 // pred_fallthru
          _
      $region40: #{tpu_custom_call.1} parent=5 // pred_fallthru
        _
    $region6: #{tpu_custom_call.1} parent=1 // loop_footer
      %s18 = sadd.s32 1, %s14
    $region7: #{tpu_custom_call.1} parent=1 // loop_footer_branch
      %13 = sbr.rel target = $region3
    $region8: #{tpu_custom_call.1} parent=1 // loop_exit
      _
    %523 = vsyncpa [#allocation3], 1
    %s524 = scalar_lea.sflag [#allocation3], 1
    %525 = vsyncpa %s524, 1
    %526 = vsyncpa [#allocation4], 1
    %s527 = scalar_lea.sflag [#allocation4], 1
    %528 = vsyncpa %s527, 1

</llo_original>
